<compile_context>
chip_gen: v7x
topology: tpu7x:2x2x1
jax: 0.10.0
libtpu: 0.0.40
codegen_flags: <defaults>
</compile_context>

<pallas_src>
import functools
import math

import jax
import jax.numpy as jnp
from jax.experimental import pallas as pl
from jax.experimental.pallas import tpu as pltpu


def _stce_kernel(x_ref, t_ref, loss_ref, *, inv_temp_s, inv_temp_t):
    # x_ref, t_ref: (rows, C) block.  loss_ref: (rows, 1) per-row loss.
    x = x_ref[...].astype(jnp.float32) * inv_temp_s
    t = t_ref[...].astype(jnp.float32) * inv_temp_t

    # Unnormalized softmax of the teacher logits (normalize once per row).
    t_max = jnp.max(t, axis=-1, keepdims=True)
    t_exp = jnp.exp(t - t_max)
    t_sum = jnp.sum(t_exp, axis=-1, keepdims=True)

    # Student log-sum-exp pieces.
    x_max = jnp.max(x, axis=-1, keepdims=True)
    xs = x - x_max
    lse = jnp.log(jnp.sum(jnp.exp(xs), axis=-1, keepdims=True))

    # loss = lse - sum(p * xs),  p = t_exp / t_sum,  sum(p) == 1
    dot = jnp.sum(t_exp * xs, axis=-1, keepdims=True)
    loss_ref[...] = lse - dot * pl.reciprocal(t_sum, approx=False)


def _pick_row_block(R, C):
    """Rows per grid step: ~1 MiB of f32 input per block, multiple of 8."""
    target_bytes = 1 << 20
    rb = target_bytes // max(1, C * 4)
    rb = max(8, min(rb, 1024))
    rb = (rb // 8) * 8
    r_pad8 = -(-R // 8) * 8            # rows rounded up to a multiple of 8
    return min(rb, max(8, r_pad8))


def soft_target_cross_entropy(x, target, temp_t=1.0, temp_s=1.0, mean=True):
    """SoftTargetCrossEntropy_v2.forward.  x, target: (..., C)."""
    assert x.shape == target.shape, (x.shape, target.shape)
    *lead, C = x.shape
    R = math.prod(lead) if lead else 1
    x2 = x.reshape(R, C)
    t2 = target.reshape(R, C)

    rb = _pick_row_block(R, C)
    r_pad = -(-R // rb) * rb
    if r_pad != R:
        pad = r_pad - R
        x2 = jnp.pad(x2, ((0, pad), (0, 0)))
        t2 = jnp.pad(t2, ((0, pad), (0, 0)))

    kernel = functools.partial(_stce_kernel,
                               inv_temp_s=1.0 / float(temp_s),
                               inv_temp_t=1.0 / float(temp_t))
    loss = pl.pallas_call(
        kernel,
        out_shape=jax.ShapeDtypeStruct((r_pad, 1), jnp.float32),
        grid=(r_pad // rb,),
        in_specs=[
            pl.BlockSpec((rb, C), lambda i: (i, 0)),
            pl.BlockSpec((rb, C), lambda i: (i, 0)),
        ],
        out_specs=pl.BlockSpec((rb, 1), lambda i: (i, 0)),
        compiler_params=pltpu.CompilerParams(
            dimension_semantics=("parallel",)),
    )(x2, t2)

    loss = loss[:R, 0]                 # drop padded rows
    if mean:
        return jnp.mean(loss)
    if lead:
        return loss.reshape(tuple(lead))
    return loss[0]


def _ref_forward(x, target, temp_t=1.0, temp_s=1.0, mean=True):
    """Pure-JAX reference for validation."""
    p = jax.nn.softmax(target.astype(jnp.float32) / temp_t, axis=-1)
    log_q = jax.nn.log_softmax(x.astype(jnp.float32) / temp_s, axis=-1)
    loss = jnp.sum(-p * log_q, axis=-1)
    return jnp.mean(loss) if mean else loss


if __name__ == "__main__":
    key = jax.random.PRNGKey(0)

    # Test 1: small shapes: batch=4, seq=16, classes=32
    B, S, C = 4, 16, 32
    temp_t, temp_s = 2.0, 0.5
    kx, kt, key = (*jax.random.split(key, 2), key)
    kx, kt = jax.random.split(key)
    x = jax.random.normal(kx, (B, S, C), jnp.float32) * 2.0
    target = jax.random.normal(kt, (B, S, C), jnp.float32) * 2.0

    out_mean = jax.block_until_ready(
        soft_target_cross_entropy(x, target, temp_t, temp_s, mean=True))
    out_vec = jax.block_until_ready(
        soft_target_cross_entropy(x, target, temp_t, temp_s, mean=False))
    ref_mean = _ref_forward(x, target, temp_t, temp_s, True)
    ref_vec = _ref_forward(x, target, temp_t, temp_s, False)

    assert out_vec.shape == (B, S), out_vec.shape
    assert jnp.allclose(out_vec, ref_vec, atol=1e-5, rtol=1e-5), float(
        jnp.max(jnp.abs(out_vec - ref_vec)))
    assert jnp.allclose(out_mean, ref_mean, atol=1e-5, rtol=1e-5), float(
        jnp.abs(out_mean - ref_mean))

    # Test 2: awkward (non-multiple-of-8 rows, non-multiple-of-128 classes),
    # exercises the row-padding path.
    key2 = jax.random.PRNGKey(0)
    k1, k2 = jax.random.split(key2)
    x2 = jax.random.normal(k1, (7, 13, 10), jnp.float32) * 3.0
    t2 = jax.random.normal(k2, (7, 13, 10), jnp.float32) * 3.0
    out2 = jax.block_until_ready(
        soft_target_cross_entropy(x2, t2, 1.5, 1.0, mean=False))
    ref2 = _ref_forward(x2, t2, 1.5, 1.0, False)
    assert out2.shape == (7, 13), out2.shape
    assert jnp.allclose(out2, ref2, atol=1e-5, rtol=1e-5), float(
        jnp.max(jnp.abs(out2 - ref2)))

    print("KERNEL_OK")
</pallas_src>

<mosaic_0001>
module attributes {stable_mosaic.version = 11 : i64} {
  func.func @_stce_kernel(%arg0: i32, %arg1: memref<64x32xf32, #tpu.memory_space<vmem>>, %arg2: memref<64x32xf32, #tpu.memory_space<vmem>>, %arg3: memref<64x1xf32, #tpu.memory_space<vmem>>) attributes {dimension_semantics = [#tpu.dimension_semantics<parallel>], iteration_bounds = array<i64: 1>, scalar_prefetch = 0 : i64, scratch_operands = 0 : i64, tpu.core_type = #tpu.core_type<tc>, window_params = [{transform_indices = @transform_0, window_bounds = array<i64: 64, 32>}, {transform_indices = @transform_1, window_bounds = array<i64: 64, 32>}, {transform_indices = @transform_2, window_bounds = array<i64: 64, 1>}]} {
    %c0 = arith.constant 0 : index
    %c0_0 = arith.constant 0 : index
    %0 = vector.load %arg1[%c0, %c0_0] : memref<64x32xf32, #tpu.memory_space<vmem>>, vector<64x32xf32>
    %cst = arith.constant 2.000000e+00 : f32
    %1 = vector.broadcast %cst : f32 to vector<64x32xf32>
    %2 = arith.mulf %0, %1 : vector<64x32xf32>
    %c0_1 = arith.constant 0 : index
    %c0_2 = arith.constant 0 : index
    %3 = vector.load %arg2[%c0_1, %c0_2] : memref<64x32xf32, #tpu.memory_space<vmem>>, vector<64x32xf32>
    %cst_3 = arith.constant 5.000000e-01 : f32
    %4 = vector.broadcast %cst_3 : f32 to vector<64x32xf32>
    %5 = arith.mulf %3, %4 : vector<64x32xf32>
    %cst_4 = arith.constant dense<0xFF800000> : vector<64xf32>
    %6 = vector.multi_reduction <maximumf>, %5, %cst_4 [1] : vector<64x32xf32> to vector<64xf32>
    %7 = vector.shape_cast %6 : vector<64xf32> to vector<64x1xf32>
    %8 = vector.broadcast %7 : vector<64x1xf32> to vector<64x32xf32>
    %9 = arith.subf %5, %8 : vector<64x32xf32>
    %10 = math.exp %9 : vector<64x32xf32>
    %cst_5 = arith.constant dense<0.000000e+00> : vector<64xf32>
    %11 = vector.multi_reduction <add>, %10, %cst_5 [1] : vector<64x32xf32> to vector<64xf32>
    %12 = vector.shape_cast %11 : vector<64xf32> to vector<64x1xf32>
    %cst_6 = arith.constant dense<0xFF800000> : vector<64xf32>
    %13 = vector.multi_reduction <maximumf>, %2, %cst_6 [1] : vector<64x32xf32> to vector<64xf32>
    %14 = vector.shape_cast %13 : vector<64xf32> to vector<64x1xf32>
    %15 = vector.broadcast %14 : vector<64x1xf32> to vector<64x32xf32>
    %16 = arith.subf %2, %15 : vector<64x32xf32>
    %17 = math.exp %16 : vector<64x32xf32>
    %cst_7 = arith.constant dense<0.000000e+00> : vector<64xf32>
    %18 = vector.multi_reduction <add>, %17, %cst_7 [1] : vector<64x32xf32> to vector<64xf32>
    %19 = vector.shape_cast %18 : vector<64xf32> to vector<64x1xf32>
    %20 = math.log %19 : vector<64x1xf32>
    %21 = arith.mulf %10, %16 : vector<64x32xf32>
    %cst_8 = arith.constant dense<0.000000e+00> : vector<64xf32>
    %22 = vector.multi_reduction <add>, %21, %cst_8 [1] : vector<64x32xf32> to vector<64xf32>
    %23 = vector.shape_cast %22 : vector<64xf32> to vector<64x1xf32>
    %24 = tpu.reciprocal %12 : vector<64x1xf32> -> vector<64x1xf32>
    %25 = arith.mulf %23, %24 : vector<64x1xf32>
    %26 = arith.subf %20, %25 : vector<64x1xf32>
    %c0_9 = arith.constant 0 : index
    %c0_10 = arith.constant 0 : index
    %27 = vector.load %arg3[%c0_9, %c0_10] : memref<64x1xf32, #tpu.memory_space<vmem>>, vector<64x1xf32>
    tpu.vector_store %arg3[%c0_9, %c0_10], %26 {strides = array<i32>} : memref<64x1xf32, #tpu.memory_space<vmem>>, vector<64x1xf32>,
    return
  }
  func.func @transform_0(%arg0: i32) -> (i32, i32) {
    %c0_i32 = arith.constant 0 : i32
    %c0_i32_0 = arith.constant 0 : i32
    return %arg0, %c0_i32 : i32, i32
  }
  func.func @transform_1(%arg0: i32) -> (i32, i32) {
    %c0_i32 = arith.constant 0 : i32
    %c0_i32_0 = arith.constant 0 : i32
    return %arg0, %c0_i32 : i32, i32
  }
  func.func @transform_2(%arg0: i32) -> (i32, i32) {
    %c0_i32 = arith.constant 0 : i32
    %c0_i32_0 = arith.constant 0 : i32
    return %arg0, %c0_i32 : i32, i32
  }
}

</mosaic_0001>

<llo_original>
// kernel: tpu_custom_call.1
$region0: #{tpu_custom_call.1}
  #allocation0 [shape = 'u32[]', space=smem, size = 0x4, offset = 0x4, fixed_abs, tag = 'smem constant byte address 0x4 - core index']
  #allocation1 [shape = 'u32[144,128]{1,0:T(1,128)}', space=vmem, size = 0x12000, scoped, tag = 'internal scratch']
  %s0 = inlined_call_operand.vmem [shape: f32[64,32], index: 0, kind: input, shape index: {}]
  %s1 = inlined_call_operand.vmem [shape: f32[64,32], index: 1, kind: input, shape index: {}]
  %s2 = inlined_call_operand.vmem [shape: f32[64,1], index: 2, kind: output, shape index: {}]
  %s3 = sld [smem:[#allocation0]]
  $region18: #{tpu_custom_call.1} parent=0
    _
  %s5 = ssub.s32 1, %s3
  %s6 = scalar_select 0, %s5, %s3
  // Predicated region
  $region2: #{tpu_custom_call.1} parent=0 // pred_check
    _
  $region3: #{tpu_custom_call.1} parent=0 // pred_check_branch
    %8 = sbr.rel (0) target = $region5
  $region4: #{tpu_custom_call.1} parent=0 // pred_region
    _
  $region5: #{tpu_custom_call.1} parent=0 // pred_fallthru
    _
  // Predicated region
  $region6: #{tpu_custom_call.1} parent=0 // pred_check
    _
  $region7: #{tpu_custom_call.1} parent=0 // pred_check_branch
    %10 = sbr.rel (0) target = $region9
  $region8: #{tpu_custom_call.1} parent=0 // pred_region
    _
  $region9: #{tpu_custom_call.1} parent=0 // pred_fallthru
    _
  %v11 = vld [vmem:[%s0] sm:$0xff]
  %v12 = vld [vmem:[%s0 + $0x8] sm:$0xff]
  %v13 = vld [vmem:[%s0 + $0x10] sm:$0xff]
  %v14 = vld [vmem:[%s0 + $0x18] sm:$0xff]
  %v15 = vld [vmem:[%s0 + $0x20] sm:$0xff]
  %v16 = vld [vmem:[%s0 + $0x28] sm:$0xff]
  %v17 = vld [vmem:[%s0 + $0x30] sm:$0xff]
  %v18 = vld [vmem:[%s0 + $0x38] sm:$0xff]
  %v19 = vmul.f32 %v11, 2.0
  %v20 = vmul.f32 %v12, 2.0
  %v21 = vmul.f32 %v13, 2.0
  %v22 = vmul.f32 %v14, 2.0
  %v23 = vmul.f32 %v15, 2.0
  %v24 = vmul.f32 %v16, 2.0
  %v25 = vmul.f32 %v17, 2.0
  %v26 = vmul.f32 %v18, 2.0
  %v27 = vld [vmem:[%s1] sm:$0xff]
  %v28 = vld [vmem:[%s1 + $0x8] sm:$0xff]
  %v29 = vld [vmem:[%s1 + $0x10] sm:$0xff]
  %v30 = vld [vmem:[%s1 + $0x18] sm:$0xff]
  %v31 = vld [vmem:[%s1 + $0x20] sm:$0xff]
  %v32 = vld [vmem:[%s1 + $0x28] sm:$0xff]
  %v33 = vld [vmem:[%s1 + $0x30] sm:$0xff]
  %v34 = vld [vmem:[%s1 + $0x38] sm:$0xff]
  %v35 = vmul.f32 %v27, 0.5
  %v36 = vmul.f32 %v28, 0.5
  %v37 = vmul.f32 %v29, 0.5
  %v38 = vmul.f32 %v30, 0.5
  %v39 = vmul.f32 %v31, 0.5
  %v40 = vmul.f32 %v32, 0.5
  %v41 = vmul.f32 %v33, 0.5
  %v42 = vmul.f32 %v34, 0.5
  %vm43 = vcmask 261120
  %v44 = vsel %vm43, %v35, -inf
  %45 = vmax.xlane.f32.xlu0 %v44
  %v46 = vpop.xlane.xlu0 %45
  %v47 = vsel %vm43, %v36, -inf
  %48 = vmax.xlane.f32.xlu0 %v47
  %v49 = vpop.xlane.xlu0 %48
  %v50 = vsel %vm43, %v37, -inf
  %51 = vmax.xlane.f32.xlu0 %v50
  %v52 = vpop.xlane.xlu0 %51
  %v53 = vsel %vm43, %v38, -inf
  %54 = vmax.xlane.f32.xlu0 %v53
  %v55 = vpop.xlane.xlu0 %54
  %v56 = vsel %vm43, %v39, -inf
  %57 = vmax.xlane.f32.xlu0 %v56
  %v58 = vpop.xlane.xlu0 %57
  %v59 = vsel %vm43, %v40, -inf
  %60 = vmax.xlane.f32.xlu0 %v59
  %v61 = vpop.xlane.xlu0 %60
  %v62 = vsel %vm43, %v41, -inf
  %63 = vmax.xlane.f32.xlu0 %v62
  %v64 = vpop.xlane.xlu0 %63
  %v65 = vsel %vm43, %v42, -inf
  %66 = vmax.xlane.f32.xlu0 %v65
  %v67 = vpop.xlane.xlu0 %66
  %v68 = vsub.f32 %v35, %v46
  %v69 = vsub.f32 %v36, %v49
  %v70 = vsub.f32 %v37, %v52
  %v71 = vsub.f32 %v38, %v55
  %v72 = vsub.f32 %v39, %v58
  %v73 = vsub.f32 %v40, %v61
  %v74 = vsub.f32 %v41, %v64
  %v75 = vsub.f32 %v42, %v67
  %v76 = vmul.f32 %v68, 1.442695
  %v77 = vpow.pop %v76
  %v78 = vmul.f32 %v69, 1.442695
  %v79 = vpow.pop %v78
  %v80 = vmul.f32 %v70, 1.442695
  %v81 = vpow.pop %v80
  %v82 = vmul.f32 %v71, 1.442695
  %v83 = vpow.pop %v82
  %v84 = vmul.f32 %v72, 1.442695
  %v85 = vpow.pop %v84
  %v86 = vmul.f32 %v73, 1.442695
  %v87 = vpow.pop %v86
  %v88 = vmul.f32 %v74, 1.442695
  %v89 = vpow.pop %v88
  %v90 = vmul.f32 %v75, 1.442695
  %v91 = vpow.pop %v90
  %v92 = vsel %vm43, %v77, 0.0
  %93 = vadd.xlane.f32.xlu0 %v92
  %v94 = vpop.xlane.xlu0 %93
  %v95 = vsel %vm43, %v79, 0.0
  %96 = vadd.xlane.f32.xlu0 %v95
  %v97 = vpop.xlane.xlu0 %96
  %v98 = vsel %vm43, %v81, 0.0
  %99 = vadd.xlane.f32.xlu0 %v98
  %v100 = vpop.xlane.xlu0 %99
  %v101 = vsel %vm43, %v83, 0.0
  %102 = vadd.xlane.f32.xlu0 %v101
  %v103 = vpop.xlane.xlu0 %102
  %v104 = vsel %vm43, %v85, 0.0
  %105 = vadd.xlane.f32.xlu0 %v104
  %v106 = vpop.xlane.xlu0 %105
  %v107 = vsel %vm43, %v87, 0.0
  %108 = vadd.xlane.f32.xlu0 %v107
  %v109 = vpop.xlane.xlu0 %108
  %v110 = vsel %vm43, %v89, 0.0
  %111 = vadd.xlane.f32.xlu0 %v110
  %v112 = vpop.xlane.xlu0 %111
  %v113 = vsel %vm43, %v91, 0.0
  %114 = vadd.xlane.f32.xlu0 %v113
  %v115 = vpop.xlane.xlu0 %114
  %v116 = vsel %vm43, %v19, -inf
  %117 = vmax.xlane.f32.xlu0 %v116
  %v118 = vpop.xlane.xlu0 %117
  %v119 = vsel %vm43, %v20, -inf
  %120 = vmax.xlane.f32.xlu0 %v119
  %v121 = vpop.xlane.xlu0 %120
  %v122 = vsel %vm43, %v21, -inf
  %123 = vmax.xlane.f32.xlu0 %v122
  %v124 = vpop.xlane.xlu0 %123
  %v125 = vsel %vm43, %v22, -inf
  %126 = vmax.xlane.f32.xlu0 %v125
  %v127 = vpop.xlane.xlu0 %126
  %v128 = vsel %vm43, %v23, -inf
  %129 = vmax.xlane.f32.xlu0 %v128
  %v130 = vpop.xlane.xlu0 %129
  %v131 = vsel %vm43, %v24, -inf
  %132 = vmax.xlane.f32.xlu0 %v131
  %v133 = vpop.xlane.xlu0 %132
  %v134 = vsel %vm43, %v25, -inf
  %135 = vmax.xlane.f32.xlu0 %v134
  %v136 = vpop.xlane.xlu0 %135
  %v137 = vsel %vm43, %v26, -inf
  %138 = vmax.xlane.f32.xlu0 %v137
  %v139 = vpop.xlane.xlu0 %138
  %v140 = vsub.f32 %v19, %v118
  %v141 = vsub.f32 %v20, %v121
  %v142 = vsub.f32 %v21, %v124
  %v143 = vsub.f32 %v22, %v127
  %v144 = vsub.f32 %v23, %v130
  %v145 = vsub.f32 %v24, %v133
  %v146 = vsub.f32 %v25, %v136
  %v147 = vsub.f32 %v26, %v139
  %v148 = vmul.f32 %v140, 1.442695
  %v149 = vpow.pop %v148
  %v150 = vmul.f32 %v141, 1.442695
  %v151 = vpow.pop %v150
  %v152 = vmul.f32 %v142, 1.442695
  %v153 = vpow.pop %v152
  %v154 = vmul.f32 %v143, 1.442695
  %v155 = vpow.pop %v154
  %v156 = vmul.f32 %v144, 1.442695
  %v157 = vpow.pop %v156
  %v158 = vmul.f32 %v145, 1.442695
  %v159 = vpow.pop %v158
  %v160 = vmul.f32 %v146, 1.442695
  %v161 = vpow.pop %v160
  %v162 = vmul.f32 %v147, 1.442695
  %v163 = vpow.pop %v162
  %v164 = vsel %vm43, %v149, 0.0
  %165 = vadd.xlane.f32.xlu0 %v164
  %v166 = vpop.xlane.xlu0 %165
  %v167 = vsel %vm43, %v151, 0.0
  %168 = vadd.xlane.f32.xlu0 %v167
  %v169 = vpop.xlane.xlu0 %168
  %v170 = vsel %vm43, %v153, 0.0
  %171 = vadd.xlane.f32.xlu0 %v170
  %v172 = vpop.xlane.xlu0 %171
  %v173 = vsel %vm43, %v155, 0.0
  %174 = vadd.xlane.f32.xlu0 %v173
  %v175 = vpop.xlane.xlu0 %174
  %v176 = vsel %vm43, %v157, 0.0
  %177 = vadd.xlane.f32.xlu0 %v176
  %v178 = vpop.xlane.xlu0 %177
  %v179 = vsel %vm43, %v159, 0.0
  %180 = vadd.xlane.f32.xlu0 %v179
  %v181 = vpop.xlane.xlu0 %180
  %v182 = vsel %vm43, %v161, 0.0
  %183 = vadd.xlane.f32.xlu0 %v182
  %v184 = vpop.xlane.xlu0 %183
  %v185 = vsel %vm43, %v163, 0.0
  %186 = vadd.xlane.f32.xlu0 %v185
  %v187 = vpop.xlane.xlu0 %186
  %v188 = vlog2.pop %v166
  %v189 = vmul.f32 %v188, 0.6931472
  %v190 = vlog2.pop %v169
  %v191 = vmul.f32 %v190, 0.6931472
  %v192 = vlog2.pop %v172
  %v193 = vmul.f32 %v192, 0.6931472
  %v194 = vlog2.pop %v175
  %v195 = vmul.f32 %v194, 0.6931472
  %v196 = vlog2.pop %v178
  %v197 = vmul.f32 %v196, 0.6931472
  %v198 = vlog2.pop %v181
  %v199 = vmul.f32 %v198, 0.6931472
  %v200 = vlog2.pop %v184
  %v201 = vmul.f32 %v200, 0.6931472
  %v202 = vlog2.pop %v187
  %v203 = vmul.f32 %v202, 0.6931472
  %v204 = vmul.f32 %v77, %v140
  %v205 = vmul.f32 %v79, %v141
  %v206 = vmul.f32 %v81, %v142
  %v207 = vmul.f32 %v83, %v143
  %v208 = vmul.f32 %v85, %v144
  %v209 = vmul.f32 %v87, %v145
  %v210 = vmul.f32 %v89, %v146
  %v211 = vmul.f32 %v91, %v147
  %v212 = vsel %vm43, %v204, 0.0
  %213 = vadd.xlane.f32.xlu0 %v212
  %v214 = vpop.xlane.xlu0 %213
  %v215 = vsel %vm43, %v205, 0.0
  %216 = vadd.xlane.f32.xlu0 %v215
  %v217 = vpop.xlane.xlu0 %216
  %v218 = vsel %vm43, %v206, 0.0
  %219 = vadd.xlane.f32.xlu0 %v218
  %v220 = vpop.xlane.xlu0 %219
  %v221 = vsel %vm43, %v207, 0.0
  %222 = vadd.xlane.f32.xlu0 %v221
  %v223 = vpop.xlane.xlu0 %222
  %v224 = vsel %vm43, %v208, 0.0
  %225 = vadd.xlane.f32.xlu0 %v224
  %v226 = vpop.xlane.xlu0 %225
  %v227 = vsel %vm43, %v209, 0.0
  %228 = vadd.xlane.f32.xlu0 %v227
  %v229 = vpop.xlane.xlu0 %228
  %v230 = vsel %vm43, %v210, 0.0
  %231 = vadd.xlane.f32.xlu0 %v230
  %v232 = vpop.xlane.xlu0 %231
  %v233 = vsel %vm43, %v211, 0.0
  %234 = vadd.xlane.f32.xlu0 %v233
  %v235 = vpop.xlane.xlu0 %234
  %v236 = vrcp.pop %v94
  %v237 = vrcp.pop %v97
  %v238 = vrcp.pop %v100
  %v239 = vrcp.pop %v103
  %v240 = vrcp.pop %v106
  %v241 = vrcp.pop %v109
  %v242 = vrcp.pop %v112
  %v243 = vrcp.pop %v115
  %v244 = vmul.f32 %v214, %v236
  %v245 = vmul.f32 %v217, %v237
  %v246 = vmul.f32 %v220, %v238
  %v247 = vmul.f32 %v223, %v239
  %v248 = vmul.f32 %v226, %v240
  %v249 = vmul.f32 %v229, %v241
  %v250 = vmul.f32 %v232, %v242
  %v251 = vmul.f32 %v235, %v243
  %v252 = vsub.f32 %v189, %v244
  %v253 = vsub.f32 %v191, %v245
  %v254 = vsub.f32 %v193, %v246
  %v255 = vsub.f32 %v195, %v247
  %v256 = vsub.f32 %v197, %v248
  %v257 = vsub.f32 %v199, %v249
  %v258 = vsub.f32 %v201, %v250
  %v259 = vsub.f32 %v203, %v251
  %vm260 = vcmask 7168
  %261 = vst.msk [vmem:[%s2] sm:$0xff] %vm260, %v252
  %262 = vst.msk [vmem:[%s2 + $0x8] sm:$0xff] %vm260, %v253
  %263 = vst.msk [vmem:[%s2 + $0x10] sm:$0xff] %vm260, %v254
  %264 = vst.msk [vmem:[%s2 + $0x18] sm:$0xff] %vm260, %v255
  %265 = vst.msk [vmem:[%s2 + $0x20] sm:$0xff] %vm260, %v256
  %266 = vst.msk [vmem:[%s2 + $0x28] sm:$0xff] %vm260, %v257
  %267 = vst.msk [vmem:[%s2 + $0x30] sm:$0xff] %vm260, %v258
  %268 = vst.msk [vmem:[%s2 + $0x38] sm:$0xff] %vm260, %v259
  // Predicated region
  $region10: #{tpu_custom_call.1} parent=0 // pred_check
    _
  $region11: #{tpu_custom_call.1} parent=0 // pred_check_branch
    %270 = sbr.rel (0) target = $region13
  $region12: #{tpu_custom_call.1} parent=0 // pred_region
    _
  $region13: #{tpu_custom_call.1} parent=0 // pred_fallthru
    _
  // Predicated region
  $region14: #{tpu_custom_call.1} parent=0 // pred_check
    _
  $region15: #{tpu_custom_call.1} parent=0 // pred_check_branch
    %272 = sbr.rel (0) target = $region17
  $region16: #{tpu_custom_call.1} parent=0 // pred_region
    _
  $region17: #{tpu_custom_call.1} parent=0 // pred_fallthru
    _

</llo_original>
